<compile_context>
chip_gen: v6e
topology: v6e:2x2x1
jax: 0.10.0
libtpu: 0.0.40
codegen_flags: <defaults>
</compile_context>

<pallas_src>
import jax
import jax.numpy as jnp
from jax.experimental import pallas as pl
from jax.experimental.pallas import tpu as pltpu


def bg_layer_kernel(scalars_ref, w_ref, x_ref, bg_ref, fg_ref, o_ref):
    # scalars_ref: SMEM (3,) f32 = [gamma_bg, gamma_fg, conv_bias]
    # w_ref  : VMEM (C, 1)   f32 1x1-conv weights (column, lane-broadcast)
    # x_ref  : VMEM (1, C, TN)  feature-map tile for this (batch, spatial tile)
    # bg_ref : VMEM (1, 1, TN)  background-map tile
    # fg_ref : VMEM (1, 1, TN)  foreground-map tile
    # o_ref  : VMEM (1, 1, TN)  output tile
    g_bg = scalars_ref[0]
    g_fg = scalars_ref[1]
    bias = scalars_ref[2]

    # 1x1 conv with one output channel == weighted channel sum.
    # Broadcast-multiply on the VPU, sublane reduction on the XLU.
    x = x_ref[0].astype(jnp.float32)                    # (C, TN)
    w = w_ref[...]                                      # (C, 1)
    wx = jnp.sum(w * x, axis=0, keepdims=True)          # (1, TN)

    # Channel-independent gate, computed once per tile.
    bg = bg_ref[0].astype(jnp.float32)                  # (1, TN)
    fg = fg_ref[0].astype(jnp.float32)                  # (1, TN)
    gate = 1.0 + g_bg * bg + g_fg * fg                  # (1, TN)

    o_ref[0] = (wx * gate + bias).astype(o_ref.dtype)


def _pick_spatial_tile(n_pad, max_tile=2048):
    """Largest multiple of 128 that divides n_pad, capped at max_tile."""
    tn = min(max_tile, n_pad)
    tn = (tn // 128) * 128
    while n_pad % tn != 0:
        tn -= 128
    return tn


def bg_layer_forward(x, bg, fg, conv_w, conv_b, gamma_bg, gamma_fg,
                     *, max_tile=2048):
    """x: (B,C,H,W), bg/fg: (B,1,H,W), conv_w: (1,C,1,1), conv_b: (1,)."""
    B, C, H, W = x.shape
    N = H * W
    N_pad = ((N + 127) // 128) * 128

    x_f = x.reshape(B, C, N)
    bg_f = bg.reshape(B, 1, N)
    fg_f = fg.reshape(B, 1, N)
    if N_pad != N:
        pad = ((0, 0), (0, 0), (0, N_pad - N))
        x_f = jnp.pad(x_f, pad)
        bg_f = jnp.pad(bg_f, pad)
        fg_f = jnp.pad(fg_f, pad)

    tn = _pick_spatial_tile(N_pad, max_tile)
    n_tiles = N_pad // tn

    # True scalars in SMEM; 1x1-conv weights as a VMEM column vector.
    scalars = jnp.stack([
        gamma_bg.astype(jnp.float32).reshape(()),
        gamma_fg.astype(jnp.float32).reshape(()),
        conv_b.astype(jnp.float32).reshape(()),
    ])
    w_col = conv_w.reshape(C, 1).astype(jnp.float32)

    out = pl.pallas_call(
        bg_layer_kernel,
        out_shape=jax.ShapeDtypeStruct((B, 1, N_pad), x.dtype),
        grid_spec=pl.GridSpec(
            grid=(B, n_tiles),
            in_specs=[
                pl.BlockSpec(memory_space=pltpu.MemorySpace.SMEM),      # scalars
                pl.BlockSpec((C, 1), lambda b, n: (0, 0)),              # conv w
                pl.BlockSpec((1, C, tn), lambda b, n: (b, 0, n)),       # x
                pl.BlockSpec((1, 1, tn), lambda b, n: (b, 0, n)),       # bg
                pl.BlockSpec((1, 1, tn), lambda b, n: (b, 0, n)),       # fg
            ],
            out_specs=pl.BlockSpec((1, 1, tn), lambda b, n: (b, 0, n)),
        ),
        compiler_params=pltpu.CompilerParams(
            dimension_semantics=("parallel", "parallel")),
    )(scalars, w_col, x_f, bg_f, fg_f)

    return out[:, :, :N].reshape(B, 1, H, W)


def bg_layer_reference(x, bg, fg, conv_w, conv_b, gamma_bg, gamma_fg):
    y = x + gamma_bg * (x * bg) + gamma_fg * (x * fg)
    out = jnp.einsum("bchw,oc->bohw", y, conv_w.reshape(1, -1))
    return out + conv_b.reshape(1, 1, 1, 1)


if __name__ == "__main__":
    key = jax.random.PRNGKey(0)
    k_x, k_bg, k_fg, k_w, k_b = jax.random.split(key, 5)

    B, C, H, W = 2, 4, 16, 16                 # channel = 4, feat_size = 16
    x = jax.random.normal(k_x, (B, C, H, W), dtype=jnp.float32)
    bg = jax.random.normal(k_bg, (B, 1, H, W), dtype=jnp.float32)
    fg = jax.random.normal(k_fg, (B, 1, H, W), dtype=jnp.float32)

    # last_conv = nn.Conv2d(channel, 1, 1, 1) -> weight (1, C, 1, 1), bias (1,)
    conv_w = 0.1 * jax.random.normal(k_w, (1, C, 1, 1), dtype=jnp.float32)
    conv_b = 0.1 * jax.random.normal(k_b, (1,), dtype=jnp.float32)

    # BF_Attention gammas (nn.Parameter scalars); nonzero so the gated path is
    # actually exercised (torch init would be zeros).
    gamma_bg = jnp.array(0.5, dtype=jnp.float32)
    gamma_fg = jnp.array(-0.25, dtype=jnp.float32)

    out = bg_layer_forward(x, bg, fg, conv_w, conv_b, gamma_bg, gamma_fg)
    out = jax.block_until_ready(out)

    ref = bg_layer_reference(x, bg, fg, conv_w, conv_b, gamma_bg, gamma_fg)
    assert out.shape == (B, 1, H, W), out.shape
    assert jnp.allclose(out, ref, atol=1e-5, rtol=1e-5), "mismatch vs reference"

    print("KERNEL_OK")
</pallas_src>

<mosaic_0001>
module attributes {stable_mosaic.version = 11 : i64} {
  func.func @bg_layer_kernel(%arg0: i32, %arg1: i32, %arg2: memref<3xf32, #tpu.memory_space<smem>>, %arg3: memref<4x1xf32, #tpu.memory_space<vmem>>, %arg4: memref<1x4x256xf32, #tpu.memory_space<vmem>>, %arg5: memref<1x1x256xf32, #tpu.memory_space<vmem>>, %arg6: memref<1x1x256xf32, #tpu.memory_space<vmem>>, %arg7: memref<1x1x256xf32, #tpu.memory_space<vmem>>) attributes {dimension_semantics = [#tpu.dimension_semantics<parallel>, #tpu.dimension_semantics<parallel>], iteration_bounds = array<i64: 2, 1>, scalar_prefetch = 0 : i64, scratch_operands = 0 : i64, tpu.core_type = #tpu.core_type<tc>, window_params = [{transform_indices = @transform_0, window_bounds = array<i64: 3>}, {pipeline_mode = #tpu.pipeline_mode<synchronous>, transform_indices = @transform_1, window_bounds = array<i64: 4, 1>}, {transform_indices = @transform_2, window_bounds = array<i64: 1, 4, 256>}, {transform_indices = @transform_3, window_bounds = array<i64: 1, 1, 256>}, {transform_indices = @transform_4, window_bounds = array<i64: 1, 1, 256>}, {transform_indices = @transform_5, window_bounds = array<i64: 1, 1, 256>}]} {
    %c0 = arith.constant 0 : index
    %0 = memref.load %arg2[%c0] : memref<3xf32, #tpu.memory_space<smem>>
    %c1 = arith.constant 1 : index
    %1 = memref.load %arg2[%c1] : memref<3xf32, #tpu.memory_space<smem>>
    %c2 = arith.constant 2 : index
    %2 = memref.load %arg2[%c2] : memref<3xf32, #tpu.memory_space<smem>>
    %c0_0 = arith.constant 0 : index
    %c0_1 = arith.constant 0 : index
    %c0_2 = arith.constant 0 : index
    %3 = vector.load %arg4[%c0_0, %c0_1, %c0_2] : memref<1x4x256xf32, #tpu.memory_space<vmem>>, vector<1x4x256xf32>
    %4 = vector.shape_cast %3 : vector<1x4x256xf32> to vector<4x256xf32>
    %c0_3 = arith.constant 0 : index
    %c0_4 = arith.constant 0 : index
    %5 = vector.load %arg3[%c0_3, %c0_4] : memref<4x1xf32, #tpu.memory_space<vmem>>, vector<4x1xf32>
    %6 = vector.broadcast %5 : vector<4x1xf32> to vector<4x256xf32>
    %7 = arith.mulf %6, %4 : vector<4x256xf32>
    %cst = arith.constant dense<0.000000e+00> : vector<256xf32>
    %8 = vector.multi_reduction <add>, %7, %cst [0] : vector<4x256xf32> to vector<256xf32>
    %9 = vector.shape_cast %8 : vector<256xf32> to vector<1x256xf32>
    %c0_5 = arith.constant 0 : index
    %c0_6 = arith.constant 0 : index
    %c0_7 = arith.constant 0 : index
    %10 = vector.load %arg5[%c0_5, %c0_6, %c0_7] : memref<1x1x256xf32, #tpu.memory_space<vmem>>, vector<1x1x256xf32>
    %11 = vector.shape_cast %10 : vector<1x1x256xf32> to vector<1x256xf32>
    %c0_8 = arith.constant 0 : index
    %c0_9 = arith.constant 0 : index
    %c0_10 = arith.constant 0 : index
    %12 = vector.load %arg6[%c0_8, %c0_9, %c0_10] : memref<1x1x256xf32, #tpu.memory_space<vmem>>, vector<1x1x256xf32>
    %13 = vector.shape_cast %12 : vector<1x1x256xf32> to vector<1x256xf32>
    %14 = vector.broadcast %0 : f32 to vector<1x256xf32>
    %15 = arith.mulf %14, %11 : vector<1x256xf32>
    %cst_11 = arith.constant 1.000000e+00 : f32
    %16 = vector.broadcast %cst_11 : f32 to vector<1x256xf32>
    %17 = arith.addf %16, %15 : vector<1x256xf32>
    %18 = vector.broadcast %1 : f32 to vector<1x256xf32>
    %19 = arith.mulf %18, %13 : vector<1x256xf32>
    %20 = arith.addf %17, %19 : vector<1x256xf32>
    %21 = arith.mulf %9, %20 : vector<1x256xf32>
    %22 = vector.broadcast %2 : f32 to vector<1x256xf32>
    %23 = arith.addf %21, %22 : vector<1x256xf32>
    %c0_12 = arith.constant 0 : index
    %c0_13 = arith.constant 0 : index
    %c0_14 = arith.constant 0 : index
    %24 = vector.load %arg7[%c0_12, %c0_13, %c0_14] : memref<1x1x256xf32, #tpu.memory_space<vmem>>, vector<1x1x256xf32>
    %25 = vector.shape_cast %24 : vector<1x1x256xf32> to vector<1x256xf32>
    %26 = vector.shape_cast %23 : vector<1x256xf32> to vector<1x1x256xf32>
    tpu.vector_store %arg7[%c0_12, %c0_13, %c0_14], %26 {strides = array<i32>} : memref<1x1x256xf32, #tpu.memory_space<vmem>>, vector<1x1x256xf32>,
    return
  }
  func.func @transform_0(%arg0: i32, %arg1: i32) -> i32 {
    %c0_i32 = arith.constant 0 : i32
    %c0_i32_0 = arith.constant 0 : i32
    return %c0_i32 : i32
  }
  func.func @transform_1(%arg0: i32, %arg1: i32) -> (i32, i32) {
    %c0_i32 = arith.constant 0 : i32
    %c0_i32_0 = arith.constant 0 : i32
    %c0_i32_1 = arith.constant 0 : i32
    return %c0_i32, %c0_i32_0 : i32, i32
  }
  func.func @transform_2(%arg0: i32, %arg1: i32) -> (i32, i32, i32) {
    %c0_i32 = arith.constant 0 : i32
    %c0_i32_0 = arith.constant 0 : i32
    return %arg0, %c0_i32, %arg1 : i32, i32, i32
  }
  func.func @transform_3(%arg0: i32, %arg1: i32) -> (i32, i32, i32) {
    %c0_i32 = arith.constant 0 : i32
    %c0_i32_0 = arith.constant 0 : i32
    return %arg0, %c0_i32, %arg1 : i32, i32, i32
  }
  func.func @transform_4(%arg0: i32, %arg1: i32) -> (i32, i32, i32) {
    %c0_i32 = arith.constant 0 : i32
    %c0_i32_0 = arith.constant 0 : i32
    return %arg0, %c0_i32, %arg1 : i32, i32, i32
  }
  func.func @transform_5(%arg0: i32, %arg1: i32) -> (i32, i32, i32) {
    %c0_i32 = arith.constant 0 : i32
    %c0_i32_0 = arith.constant 0 : i32
    return %arg0, %c0_i32, %arg1 : i32, i32, i32
  }
}

</mosaic_0001>

<llo_original>
// kernel: tpu_custom_call.1
$region0: #{tpu_custom_call.1}
  #allocation0 [shape = 'u32[]', space=smem, size = 0x4, offset = 0x4, fixed_abs, tag = 'smem constant byte address 0x4 - core index']
  #allocation1 [shape = 'u32[144,128]{1,0:T(1,128)}', space=vmem, size = 0x12000, scoped, tag = 'internal scratch']
  %s0 = inlined_call_operand.hbm [shape: f32[3], index: 0, kind: input, shape index: {}]
  %s1 = inlined_call_operand.vmem [shape: f32[4,1], index: 1, kind: input, shape index: {}]
  %s2 = inlined_call_operand.hbm [shape: f32[2,4,256], index: 2, kind: input, shape index: {}]
  %s3 = inlined_call_operand.vmem [shape: f32[2,1,256], index: 3, kind: input, shape index: {}]
  %s4 = inlined_call_operand.vmem [shape: f32[2,1,256], index: 4, kind: input, shape index: {}]
  %s5 = inlined_call_operand.hbm [shape: f32[2,1,256], index: 5, kind: output, shape index: {}]
  %s6 = sld [smem:[#allocation0]]
  $region61: #{tpu_custom_call.1} parent=0
    _
  %s8 = ssub.s32 1, %s6
  %s9 = scalar_select 0, %s8, %s6
  $region1: #{tpu_custom_call.1} parent=0
    #allocation2 [shape = 'u8[512]{0}', space=smem, size = 0x200, scoped, tag = 'input window, operand 0, single buffered']
    #allocation3 [shape = 's32[2]{0}', space=sflag, size = 0x8, scoped, tag = 'scoped memory for tpu_custom_call.1']
    #allocation4 [shape = 's32[2]{0}', space=sflag, size = 0x8, scoped, tag = 'scoped memory for tpu_custom_call.1']
    #allocation5 [shape = 's32[2]{0}', space=sflag, size = 0x8, scoped, tag = 'scoped memory for tpu_custom_call.1']
    #allocation6 [shape = 'u8[8192]{0}', space=vmem, size = 0x2000, scoped, tag = 'input window, operand 2']
    #allocation7 [shape = 'u8[2048]{0}', space=vmem, size = 0x800, scoped, tag = 'output window, operand 0']
    %10 = vsyncpa [#allocation5], 0
    %11 = vsyncpa [#allocation3], 0
    %s12 = scalar_lea.sflag [#allocation3], 1
    %13 = vsyncpa %s12, 0
    %14 = vsyncpa [#allocation4], 0
    %s15 = scalar_lea.sflag [#allocation4], 1
    %16 = vsyncpa %s15, 0
    loop: start=0, step=1, limit=4
    $region2: #{tpu_custom_call.1} parent=1 // loop_pre_header
      _
    $region3: #{tpu_custom_call.1} parent=1 // loop_header
      %s18 = sphi 0, %s22
      %p19 = scmp.ge.s32.totalorder %s18, 4
      %s25 = sphi 0, %s37
      %s26 = sphi 0, %s33
      %s27 = sphi 0, %s25
      %s28 = sphi 0, %s26
      %s29 = sphi 0, %s27
      %s30 = sphi 0, %s28
      %s38 = sphi 0, %s38
      %s40 = sphi 0, %s38
      %s41 = sphi 0, %s40
      %s55 = sphi 0, %s41
      %s59 = sphi 0, %s59
      %s61 = sphi 0, %s59
      %s62 = sphi 0, %s61
      %s76 = sphi 0, %s62
      %s84 = sphi 0, %s86
      %s87 = sphi 0, %s84
      %s88 = sphi 0, %s87
      %s104 = sphi 0, %s88
      %s112 = sphi 0, %s114
      %s115 = sphi 0, %s112
      %s116 = sphi 0, %s115
      %s132 = sphi 0, %s116
      %s140 = sphi 0, %s142
      %s143 = sphi 0, %s140
      %s144 = sphi 0, %s143
      %s160 = sphi 0, %s144
      %s168 = sphi 0, %s170
      %s171 = sphi 0, %s168
      %s172 = sphi 0, %s171
      %s188 = sphi 0, %s172
    $region4: #{tpu_custom_call.1} parent=1 // loop_header_branch
      %21 = sbr.rel (%p19) target = $region8
    $region5: #{tpu_custom_call.1} parent=1 // loop_body
      %s23 = ssub.s32 %s18, 1
      %s24 = ssub.s32 %s18, 2
      %s31 = sadd.s32 1, %s26
      %p32 = scmp.ge.s32.totalorder %s31, 1
      %s33 = scalar_select %p32, 0, %s31
      %s34 = sadd.s32 1, %s25
      %s35 = scalar_select %p32, %s34, %s25
      %p36 = scmp.ge.s32.totalorder %s35, 2
      %s37 = scalar_select %p36, 0, %s35
      %s39 = sadd.s32 %s38, 1
      %p42 = scmp.eq.s32.totalorder %s18, 1
      %p43 = scmp.ne.s32.totalorder %s38, %s40
      %p44 = scmp.eq.s32.totalorder %s18, 0
      %p45 = por %p43, %p44
      %p46 = scmp.ne.s32.totalorder %s38, %s40
      %p47 = scmp.eq.s32.totalorder %s23, 1
      %p48 = por %p46, %p47
      %p49 = scmp.ne.s32.totalorder %s40, %s41
      %p50 = scmp.eq.s32.totalorder %s23, 0
      %p51 = por %p49, %p50
      %p52 = scmp.ne.s32.totalorder %s40, %s41
      %p53 = scmp.eq.s32.totalorder %s24, 1
      %p54 = por %p52, %p53
      %p56 = scmp.ne.s32.totalorder %s41, %s55
      %p57 = scmp.eq.s32.totalorder %s24, 0
      %p58 = por %p56, %p57
      %s60 = sadd.s32 %s59, 1
      %p63 = scmp.eq.s32.totalorder %s18, 1
      %p64 = scmp.ne.s32.totalorder %s59, %s61
      %p65 = scmp.eq.s32.totalorder %s18, 0
      %p66 = por %p64, %p65
      %p67 = scmp.ne.s32.totalorder %s59, %s61
      %p68 = scmp.eq.s32.totalorder %s23, 1
      %p69 = por %p67, %p68
      %p70 = scmp.ne.s32.totalorder %s61, %s62
      %p71 = scmp.eq.s32.totalorder %s23, 0
      %p72 = por %p70, %p71
      %p73 = scmp.ne.s32.totalorder %s61, %s62
      %p74 = scmp.eq.s32.totalorder %s24, 1
      %p75 = por %p73, %p74
      %p77 = scmp.ne.s32.totalorder %s62, %s76
      %p78 = scmp.eq.s32.totalorder %s24, 0
      %p79 = por %p77, %p78
      %s80 = ssub.s32 %s25, %s37
      %s81 = ssub.s32 %s26, %s33
      %s82 = sor.u32 %s80, %s81
      %p83 = scmp.eq.s32.totalorder %s82, 0
      %s85 = sadd.s32 %s84, 1
      %s86 = scalar_select %p83, %s84, %s85
      %p89 = pneg %p83
      %p90 = scmp.eq.s32.totalorder %s18, 1
      %p91 = por %p89, %p90
      %p92 = scmp.ne.s32.totalorder %s84, %s87
      %p93 = scmp.eq.s32.totalorder %s18, 0
      %p94 = por %p92, %p93
      %p95 = scmp.ne.s32.totalorder %s84, %s87
      %p96 = scmp.eq.s32.totalorder %s23, 1
      %p97 = por %p95, %p96
      %p98 = scmp.ne.s32.totalorder %s87, %s88
      %p99 = scmp.eq.s32.totalorder %s23, 0
      %p100 = por %p98, %p99
      %p101 = scmp.ne.s32.totalorder %s87, %s88
      %p102 = scmp.eq.s32.totalorder %s24, 1
      %p103 = por %p101, %p102
      %p105 = scmp.ne.s32.totalorder %s88, %s104
      %p106 = scmp.eq.s32.totalorder %s24, 0
      %p107 = por %p105, %p106
      %s108 = ssub.s32 %s25, %s37
      %s109 = ssub.s32 %s26, %s33
      %s110 = sor.u32 %s108, %s109
      %p111 = scmp.eq.s32.totalorder %s110, 0
      %s113 = sadd.s32 %s112, 1
      %s114 = scalar_select %p111, %s112, %s113
      %p117 = pneg %p111
      %p118 = scmp.eq.s32.totalorder %s18, 1
      %p119 = por %p117, %p118
      %p120 = scmp.ne.s32.totalorder %s112, %s115
      %p121 = scmp.eq.s32.totalorder %s18, 0
      %p122 = por %p120, %p121
      %p123 = scmp.ne.s32.totalorder %s112, %s115
      %p124 = scmp.eq.s32.totalorder %s23, 1
      %p125 = por %p123, %p124
      %p126 = scmp.ne.s32.totalorder %s115, %s116
      %p127 = scmp.eq.s32.totalorder %s23, 0
      %p128 = por %p126, %p127
      %p129 = scmp.ne.s32.totalorder %s115, %s116
      %p130 = scmp.eq.s32.totalorder %s24, 1
      %p131 = por %p129, %p130
      %p133 = scmp.ne.s32.totalorder %s116, %s132
      %p134 = scmp.eq.s32.totalorder %s24, 0
      %p135 = por %p133, %p134
      %s136 = ssub.s32 %s25, %s37
      %s137 = ssub.s32 %s26, %s33
      %s138 = sor.u32 %s136, %s137
      %p139 = scmp.eq.s32.totalorder %s138, 0
      %s141 = sadd.s32 %s140, 1
      %s142 = scalar_select %p139, %s140, %s141
      %p145 = pneg %p139
      %p146 = scmp.eq.s32.totalorder %s18, 1
      %p147 = por %p145, %p146
      %p148 = scmp.ne.s32.totalorder %s140, %s143
      %p149 = scmp.eq.s32.totalorder %s18, 0
      %p150 = por %p148, %p149
      %p151 = scmp.ne.s32.totalorder %s140, %s143
      %p152 = scmp.eq.s32.totalorder %s23, 1
      %p153 = por %p151, %p152
      %p154 = scmp.ne.s32.totalorder %s143, %s144
      %p155 = scmp.eq.s32.totalorder %s23, 0
      %p156 = por %p154, %p155
      %p157 = scmp.ne.s32.totalorder %s143, %s144
      %p158 = scmp.eq.s32.totalorder %s24, 1
      %p159 = por %p157, %p158
      %p161 = scmp.ne.s32.totalorder %s144, %s160
      %p162 = scmp.eq.s32.totalorder %s24, 0
      %p163 = por %p161, %p162
      %s164 = ssub.s32 %s25, %s37
      %s165 = ssub.s32 %s26, %s33
      %s166 = sor.u32 %s164, %s165
      %p167 = scmp.eq.s32.totalorder %s166, 0
      %s169 = sadd.s32 %s168, 1
      %s170 = scalar_select %p167, %s168, %s169
      %p173 = pneg %p167
      %p174 = scmp.eq.s32.totalorder %s18, 1
      %p175 = por %p173, %p174
      %p176 = scmp.ne.s32.totalorder %s168, %s171
      %p177 = scmp.eq.s32.totalorder %s18, 0
      %p178 = por %p176, %p177
      %p179 = scmp.ne.s32.totalorder %s168, %s171
      %p180 = scmp.eq.s32.totalorder %s23, 1
      %p181 = por %p179, %p180
      %p182 = scmp.ne.s32.totalorder %s171, %s172
      %p183 = scmp.eq.s32.totalorder %s23, 0
      %p184 = por %p182, %p183
      %p185 = scmp.ne.s32.totalorder %s171, %s172
      %p186 = scmp.eq.s32.totalorder %s24, 1
      %p187 = por %p185, %p186
      %p189 = scmp.ne.s32.totalorder %s172, %s188
      %p190 = scmp.eq.s32.totalorder %s24, 0
      %p191 = por %p189, %p190
      %p192 = scmp.le.s32.totalorder 1, %s18
      %p193 = scmp.lt.s32.totalorder %s18, 3
      %p194 = pnand %p192, %p193
      %p195 = pneg %p194
      // Predicated region
      $region9: #{tpu_custom_call.1} parent=5 // pred_check
        _
      $region10: #{tpu_custom_call.1} parent=5 // pred_check_branch
        %197 = sbr.rel (%p194) target = $region12
      $region11: #{tpu_custom_call.1} parent=5 // pred_region
        %s198 = ssub.s32 %s18, 1
        // Predicated region
        $region13: #{tpu_custom_call.1} parent=11 // pred_check
          %p199 = pneg %p51
        $region14: #{tpu_custom_call.1} parent=11 // pred_check_branch
          %201 = sbr.rel (%p199) target = $region16
        $region15: #{tpu_custom_call.1} parent=11 // pred_region
          %s203 = ssub.s32 16, 16
          %204 = vsyncadd [#allocation5], %s203
          %207 = dma.hbm_to_smem %s0, 16, [#allocation2], [#allocation5]
        $region16: #{tpu_custom_call.1} parent=11 // pred_fallthru
          _
        // Predicated region
        $region17: #{tpu_custom_call.1} parent=11 // pred_check
          %p208 = pneg %p72
        $region18: #{tpu_custom_call.1} parent=11 // pred_check_branch
          %210 = sbr.rel (%p208) target = $region20
        $region19: #{tpu_custom_call.1} parent=11 // pred_region
          _
        $region20: #{tpu_custom_call.1} parent=11 // pred_fallthru
          _
      $region12: #{tpu_custom_call.1} parent=5 // pred_fallthru
        _
      %p211 = scmp.lt.s32.totalorder %s18, 2
      // Predicated region
      $region21: #{tpu_custom_call.1} parent=5 // pred_check
        %p212 = pneg %p211
      $region22: #{tpu_custom_call.1} parent=5 // pred_check_branch
        %214 = sbr.rel (%p212) target = $region24
      $region23: #{tpu_custom_call.1} parent=5 // pred_region
        // Predicated region
        $region25: #{tpu_custom_call.1} parent=23 // pred_check
          %p215 = pneg %p94
        $region26: #{tpu_custom_call.1} parent=23 // pred_check_branch
          %217 = sbr.rel (%p215) target = $region28
        $region27: #{tpu_custom_call.1} parent=23 // pred_region
          %s218 = sand.u32 %s84, 1
          %s219 = scalar_lea.sflag [#allocation3], %s218
          %s220 = sand.u32 %s84, 1
          %s221 = smul.addr %s220, 8
          %s222 = scalar_lea.vmem [#allocation6], %s221
          %s223 = smul.u32 2, %s26
          %s225 = ssub.s32 128, 128
          %226 = vsyncadd %s219, %s225
          %s227 = smul.addr %s25, 2
          %s228 = sadd.s32 %s223, %s227
          %s229 = smul.addr %s228, 64
          %s230 = scalar_lea.hbm %s2, %s229
          %s232 = sshll.u32 %s222, 4
          %s233 = int_to_ptr.vmem [resolvable:$true] %s232
          %235 = dma.hbm_to_vmem [thread:$0]  %s230, 128, %s233, %s219
        $region28: #{tpu_custom_call.1} parent=23 // pred_fallthru
          _
        // Predicated region
        $region29: #{tpu_custom_call.1} parent=23 // pred_check
          %p236 = pneg %p122
        $region30: #{tpu_custom_call.1} parent=23 // pred_check_branch
          %238 = sbr.rel (%p236) target = $region32
        $region31: #{tpu_custom_call.1} parent=23 // pred_region
          %s239 = smul.u32 2, %s26
          %p240 = scmp.lt.s32.totalorder %s25, 1
          %s241 = scalar_select %p240, %s25, 1
          %p242 = scmp.lt.s32.totalorder %s239, 1
          %s243 = scalar_select %p242, %s239, 1
          %s244 = smul.addr %s241, 2
          %s245 = sadd.s32 %s243, %s244
          %s246 = scalar_lea.vmem %s3, %s245
          %s247 = smul.u32 2, %s26
        $region32: #{tpu_custom_call.1} parent=23 // pred_fallthru
          _
        // Predicated region
        $region33: #{tpu_custom_call.1} parent=23 // pred_check
          %p248 = pneg %p150
        $region34: #{tpu_custom_call.1} parent=23 // pred_check_branch
          %250 = sbr.rel (%p248) target = $region36
        $region35: #{tpu_custom_call.1} parent=23 // pred_region
          %s251 = smul.u32 2, %s26
          %p252 = scmp.lt.s32.totalorder %s25, 1
          %s253 = scalar_select %p252, %s25, 1
          %p254 = scmp.lt.s32.totalorder %s251, 1
          %s255 = scalar_select %p254, %s251, 1
          %s256 = smul.addr %s253, 2
          %s257 = sadd.s32 %s255, %s256
          %s258 = scalar_lea.vmem %s4, %s257
          %s259 = smul.u32 2, %s26
        $region36: #{tpu_custom_call.1} parent=23 // pred_fallthru
          _
      $region24: #{tpu_custom_call.1} parent=5 // pred_fallthru
        _
      %p260 = scmp.le.s32.totalorder 1, %s18
      %p261 = scmp.lt.s32.totalorder %s18, 3
      %p262 = pnand %p260, %p261
      %p263 = pneg %p262
      // Predicated region
      $region37: #{tpu_custom_call.1} parent=5 // pred_check
        _
      $region38: #{tpu_custom_call.1} parent=5 // pred_check_branch
        %265 = sbr.rel (%p262) target = $region40
      $region39: #{tpu_custom_call.1} parent=5 // pred_region
        %s266 = ssub.s32 %s18, 1
        // Predicated region
        $region41: #{tpu_custom_call.1} parent=39 // pred_check
          %p267 = pneg %p51
        $region42: #{tpu_custom_call.1} parent=39 // pred_check_branch
          %269 = sbr.rel (%p267) target = $region44
        $region43: #{tpu_custom_call.1} parent=39 // pred_region
          %270 = dma.done [#allocation5], 16
        $region44: #{tpu_custom_call.1} parent=39 // pred_fallthru
          _
        %s271 = sand.u32 %s87, 1
        %s272 = scalar_lea.sflag [#allocation3], %s271
        %s273 = sand.u32 %s87, 1
        %s274 = smul.addr %s273, 8
        %s275 = scalar_lea.vmem [#allocation6], %s274
        // Predicated region
        $region45: #{tpu_custom_call.1} parent=39 // pred_check
          %p276 = pneg %p100
        $region46: #{tpu_custom_call.1} parent=39 // pred_check_branch
          %278 = sbr.rel (%p276) target = $region48
        $region47: #{tpu_custom_call.1} parent=39 // pred_region
          %279 = dma.done %s272, 128
        $region48: #{tpu_custom_call.1} parent=39 // pred_fallthru
          _
        %280 = sfence
        %p281 = pneg %p51
        %p282 = pneg %p48
        %p283 = pneg %p72
        %p284 = pneg %p69
        %s285 = sand.u32 %s87, 1
        %s286 = scalar_lea.sflag [#allocation3], %s285
        %s287 = sand.u32 %s87, 1
        %s288 = smul.addr %s287, 8
        %s289 = scalar_lea.vmem [#allocation6], %s288
        %p290 = pneg %p100
        %p291 = pneg %p97
        %s292 = smul.u32 2, %s28
        %p293 = scmp.lt.s32.totalorder %s27, 1
        %s294 = scalar_select %p293, %s27, 1
        %p295 = scmp.lt.s32.totalorder %s292, 1
        %s296 = scalar_select %p295, %s292, 1
        %s297 = smul.addr %s294, 2
        %s298 = sadd.s32 %s296, %s297
        %s299 = scalar_lea.vmem %s3, %s298
        %p300 = pneg %p128
        %p301 = pneg %p125
        %s302 = smul.u32 2, %s28
        %p303 = scmp.lt.s32.totalorder %s27, 1
        %s304 = scalar_select %p303, %s27, 1
        %p305 = scmp.lt.s32.totalorder %s302, 1
        %s306 = scalar_select %p305, %s302, 1
        %s307 = smul.addr %s304, 2
        %s308 = sadd.s32 %s306, %s307
        %s309 = scalar_lea.vmem %s4, %s308
        %p310 = pneg %p156
        %p311 = pneg %p153
        %p312 = pneg %p184
        %p313 = pneg %p181
        %s314 = sand.u32 %s171, 1
        %s315 = scalar_lea.sflag [#allocation4], %s314
        %s316 = sand.u32 %s171, 1
        %s317 = smul.addr %s316, 2
        %s318 = scalar_lea.vmem [#allocation7], %s317
        %s319 = smul.u32 2, %s28
        %s320 = smul.u32 2, %s28
        %p321 = scmp.lt.s32.totalorder %s27, 1
        %s322 = scalar_select %p321, %s27, 1
        %p323 = scmp.lt.s32.totalorder %s320, 1
        %s324 = scalar_select %p323, %s320, 1
        %s325 = smul.addr %s322, 2
        %s326 = sadd.s32 %s324, %s325
        %s327 = scalar_lea.vmem %s3, %s326
        %s328 = smul.u32 2, %s28
        %s329 = smul.u32 2, %s28
        %p330 = scmp.lt.s32.totalorder %s27, 1
        %s331 = scalar_select %p330, %s27, 1
        %p332 = scmp.lt.s32.totalorder %s329, 1
        %s333 = scalar_select %p332, %s329, 1
        %s334 = smul.addr %s331, 2
        %s335 = sadd.s32 %s333, %s334
        %s336 = scalar_lea.vmem %s4, %s335
        %s337 = smul.u32 2, %s28
        %s338 = smul.u32 2, %s28
        %s339 = sld [smem:[#allocation2]]
        %s340 = sld [smem:[#allocation2 + $0x1]]
        %s341 = sld [smem:[#allocation2 + $0x2]]
        %v342 = vld [vmem:[%s275] sm:$0xff]
        %v343 = vld [vmem:[%s1] sm:$0xf]
        %345 = vset.pattern.permute.xlu0 0
        %346 = vperm.xlu0 %345, %v343
        %v347 = vpop.permute.xlu0 %346
        %v350 = vcombine.high %v342, %v342
        %v352 = vmul.f32 %v347, %v342
        %v353 = vmul.f32 %v347, %v350
        %vm354 = vcmask 1043456
        %v355 = vsel %vm354, %v352, 0.0
        %v356 = vrot.slane %v355, 4
        %v357 = vadd.f32 %v355, %v356
        %v358 = vrot.slane %v357, 2
        %v359 = vadd.f32 %v357, %v358
        %v360 = vrot.slane %v359, 1
        %v361 = vadd.f32 %v359, %v360
        %v362 = vsel %vm354, %v353, 0.0
        %v363 = vrot.slane %v362, 4
        %v364 = vadd.f32 %v362, %v363
        %v365 = vrot.slane %v364, 2
        %v366 = vadd.f32 %v364, %v365
        %v367 = vrot.slane %v366, 1
        %v368 = vadd.f32 %v366, %v367
        %v369 = vld [vmem:[%s327] sm:$0x3]
        %v370 = vld [vmem:[%s336] sm:$0x3]
        %v371 = vstv %s339
        %v372 = vmul.f32 %v371, %v369
        %v373 = vadd.f32 %v372, 1.0
        %v374 = vstv %s340
        %v375 = vmul.f32 %v374, %v370
        %v376 = vadd.f32 %v373, %v375
        %v378 = vlaneseq
        %v379 = vshrl.u32 %v378, 7
        %v380 = vsub.s32 0, %v379
        %v381 = vrot.slane %v376, %v380
        %v382 = vlaneseq
        %v383 = vshrl.u32 %v382, 7
        %v384 = vsub.s32 1, %v383
        %v385 = vrot.slane %v376, %v384
        %v388 = vmul.f32 %v361, %v381
        %v389 = vmul.f32 %v368, %v385
        %v390 = vstv %s341
        %v391 = vadd.f32 %v388, %v390
        %v392 = vadd.f32 %v389, %v390
        %v395 = vcombine.low %v391, %v392
        %v397 = vunpack.c.l.s4 1966171168
        %v398 = vunpack.c.0.s8 %v397
        %v399 = vlaneseq
        %v400 = vshrl.u32 %v399, 7
        %v401 = vsub.s32 %v398, %v400
        %v402 = vrot.slane %v395, %v401
        %v404 = vunpack.c.l.s4 1966171168
        %v405 = vunpack.c.0.s8 %v404
        %v406 = vlaneseq
        %v407 = vshrl.u32 %v406, 7
        %v408 = vsub.s32 %v405, %v407
        %v409 = vrot.slane %v402, %v408
        %v411 = vlaneseq
        %vm412 = vcmp.ge.s32.totalorder %v411, 0
        %vm413 = vcmp.lt.s32.totalorder %v411, 256
        %vm414 = vmand %vm412, %vm413
        %415 = vst.msk [vmem:[%s318] sm:$0x3] %vm414, %v409
        %s416 = sand.u32 %s171, 1
        %s417 = scalar_lea.sflag [#allocation4], %s416
        %s418 = sand.u32 %s171, 1
        %s419 = smul.addr %s418, 2
        %s420 = scalar_lea.vmem [#allocation7], %s419
        // Predicated region
        $region49: #{tpu_custom_call.1} parent=39 // pred_check
          %p421 = pneg %p181
        $region50: #{tpu_custom_call.1} parent=39 // pred_check_branch
          %423 = sbr.rel (%p421) target = $region52
        $region51: #{tpu_custom_call.1} parent=39 // pred_region
          %s424 = smul.u32 2, %s28
          %s426 = ssub.s32 32, 32
          %427 = vsyncadd %s417, %s426
          %s428 = smul.addr %s27, 2
          %s429 = sadd.s32 %s424, %s428
          %s430 = smul.addr %s429, 16
          %s431 = scalar_lea.hbm %s5, %s430
          %s433 = sshll.u32 %s420, 4
          %s434 = int_to_ptr.vmem [resolvable:$true] %s433
          %436 = dma.vmem_to_hbm [thread:$0]  %s434, 32, %s431, %s417
        $region52: #{tpu_custom_call.1} parent=39 // pred_fallthru
          _
      $region40: #{tpu_custom_call.1} parent=5 // pred_fallthru
        _
      %p437 = scmp.le.s32.totalorder 2, %s18
      // Predicated region
      $region53: #{tpu_custom_call.1} parent=5 // pred_check
        %p438 = pneg %p437
      $region54: #{tpu_custom_call.1} parent=5 // pred_check_branch
        %440 = sbr.rel (%p438) target = $region56
      $region55: #{tpu_custom_call.1} parent=5 // pred_region
        %s441 = ssub.s32 %s18, 2
        // Predicated region
        $region57: #{tpu_custom_call.1} parent=55 // pred_check
          %p442 = pneg %p187
        $region58: #{tpu_custom_call.1} parent=55 // pred_check_branch
          %444 = sbr.rel (%p442) target = $region60
        $region59: #{tpu_custom_call.1} parent=55 // pred_region
          %s445 = sand.u32 %s172, 1
          %s446 = scalar_lea.sflag [#allocation4], %s445
          %s447 = sand.u32 %s172, 1
          %s448 = smul.addr %s447, 2
          %s449 = scalar_lea.vmem [#allocation7], %s448
          %450 = dma.done %s446, 32
        $region60: #{tpu_custom_call.1} parent=55 // pred_fallthru
          _
      $region56: #{tpu_custom_call.1} parent=5 // pred_fallthru
        _
    $region6: #{tpu_custom_call.1} parent=1 // loop_footer
      %s22 = sadd.s32 1, %s18
    $region7: #{tpu_custom_call.1} parent=1 // loop_footer_branch
      %17 = sbr.rel target = $region3
    $region8: #{tpu_custom_call.1} parent=1 // loop_exit
      _
    %451 = vsyncpa [#allocation3], 1
    %s452 = scalar_lea.sflag [#allocation3], 1
    %453 = vsyncpa %s452, 1
    %454 = vsyncpa [#allocation4], 1
    %s455 = scalar_lea.sflag [#allocation4], 1
    %456 = vsyncpa %s455, 1
    %457 = vsyncpa [#allocation5], 1
    %s458 = scalar_lea.sflag [#allocation5], 1
    %459 = vsyncpa %s458, 1

</llo_original>
